<compile_context>
chip_gen: v7x
topology: tpu7x:2x2x1
jax: 0.10.0
libtpu: 0.0.40
codegen_flags: <defaults>
</compile_context>

<pallas_src>
import functools

import jax
import jax.numpy as jnp
from jax.experimental import pallas as pl
from jax.experimental.pallas import tpu as pltpu

BN_EPS = 1e-5
CLAMP_MIN = 1e-8
_CLAMP_MIN_SQ = CLAMP_MIN * CLAMP_MIN


def _round_up(v, m):
    return ((v + m - 1) // m) * m


def _vmem_capacity_bytes():
    try:
        return int(pltpu.get_tpu_info().vmem_capacity_bytes)
    except Exception:
        return 64 << 20  # conservative (v7x-sized) fallback


# ---------------------------------------------------------------------------
# Kernels
# ---------------------------------------------------------------------------
def _etf_fused_kernel(x_ref, gb_ref, o_ref):
    """Small/medium path: whole array in VMEM, one pass for stats + normalize.

    x_ref:  (N, D) VMEM tile (whole array)
    gb_ref: (2, D) -> row 0 = gamma, row 1 = beta
    o_ref:  (N, D)
    """
    x = x_ref[...].astype(jnp.float32)
    inv_n = 1.0 / x.shape[0]

    s1 = jnp.sum(x, axis=0, keepdims=True)            # (1, D)
    s2 = jnp.sum(x * x, axis=0, keepdims=True)        # (1, D)
    mean = s1 * inv_n
    var = jnp.maximum(s2 * inv_n - mean * mean, 0.0)

    scale = jax.lax.rsqrt(var + BN_EPS) * gb_ref[0:1, :]
    shift = gb_ref[1:2, :] - mean * scale
    xn = x * scale + shift                             # (N, D)

    sq = jnp.sum(xn * xn, axis=1, keepdims=True)       # (N, 1)
    inv_norm = jax.lax.rsqrt(jnp.maximum(sq, _CLAMP_MIN_SQ))
    o_ref[...] = (xn * inv_norm).astype(o_ref.dtype)


def _etf_stats_kernel(x_ref, part_ref, *, n_rows, block_rows, steps_per_split,
                      ragged):
    """Phase 1 (tiled): per-split partial column sum/sumsq accumulation.

    Grid: (n_splits, steps_per_split).  part_ref (2, D) is this split's
    resident output block (accumulated in place, written back by Pallas).
    """
    c = pl.program_id(0)
    i = pl.program_id(1)

    @pl.when(i == 0)
    def _init():
        part_ref[...] = jnp.zeros_like(part_ref)

    x = x_ref[...].astype(jnp.float32)

    if not ragged:
        part_ref[0:1, :] += jnp.sum(x, axis=0, keepdims=True)
        part_ref[1:2, :] += jnp.sum(x * x, axis=0, keepdims=True)
    else:
        g = c * steps_per_split + i            # global row-tile index
        full_tiles = n_rows // block_rows      # tiles with no ragged rows

        @pl.when(g < full_tiles)
        def _accum_full():
            part_ref[0:1, :] += jnp.sum(x, axis=0, keepdims=True)
            part_ref[1:2, :] += jnp.sum(x * x, axis=0, keepdims=True)

        @pl.when(g >= full_tiles)
        def _accum_masked():
            # Covers both the ragged final tile and any clamped OOB tiles
            # introduced by the parallel split (those contribute exactly 0).
            row = g * block_rows + jax.lax.broadcasted_iota(jnp.int32, x.shape, 0)
            xm = jnp.where(row < n_rows, x, 0.0)
            part_ref[0:1, :] += jnp.sum(xm, axis=0, keepdims=True)
            part_ref[1:2, :] += jnp.sum(xm * xm, axis=0, keepdims=True)


def _etf_norm_kernel(x_ref, ss_ref, o_ref):
    """Phase 2 (tiled): apply folded BN scale/shift + row-wise L2 normalize."""
    x = x_ref[...].astype(jnp.float32)
    xn = x * ss_ref[0:1, :] + ss_ref[1:2, :]
    sq = jnp.sum(xn * xn, axis=1, keepdims=True)
    inv_norm = jax.lax.rsqrt(jnp.maximum(sq, _CLAMP_MIN_SQ))
    o_ref[...] = (xn * inv_norm).astype(o_ref.dtype)


# ---------------------------------------------------------------------------
# Wrapper
# ---------------------------------------------------------------------------
def etf_classifier_forward(x, gamma, beta, *, fused_bytes_limit=None,
                           vmem_budget_bytes=None, max_rows_per_tile=None):
    """ETF_Classifier.forward: training-mode BatchNorm1d + row-wise L2 norm."""
    n, d = x.shape
    f32 = jnp.float32
    d_lanes = _round_up(d, 128)                 # VMEM accounting only (lane padding)
    row_bytes = d_lanes * 4

    cap = _vmem_capacity_bytes()
    if vmem_budget_bytes is None:
        # ~32 MiB on v7x (64 MiB VMEM), 64 MiB on v5e/v6e (128 MiB VMEM).
        vmem_budget_bytes = min(cap // 2, 64 << 20)
    if fused_bytes_limit is None:
        # ~38 MiB on v7x, ~76 MiB on v5e/v6e.
        fused_bytes_limit = min((cap * 3) // 5, 96 << 20)

    gb = jnp.stack([gamma.astype(f32), beta.astype(f32)], axis=0)   # (2, d)

    # Working set of the fused path: in buf + out buf + ~3 f32 temporaries.
    fused_bytes = 5 * _round_up(max(n, 1), 8) * row_bytes
    if fused_bytes <= fused_bytes_limit:
        return pl.pallas_call(
            _etf_fused_kernel,
            out_shape=jax.ShapeDtypeStruct((n, d), x.dtype),
            in_specs=[
                pl.BlockSpec((n, d), lambda: (0, 0)),
                pl.BlockSpec((2, d), lambda: (0, 0)),
            ],
            out_specs=pl.BlockSpec((n, d), lambda: (0, 0)),
            compiler_params=pltpu.CompilerParams(
                vmem_limit_bytes=int(fused_bytes_limit)),
        )(x, gb)

    # ------------------------- tiled two-phase path -------------------------
    # Row tile sized by bytes: ~8 live (tm, d) f32 tile-equivalents (2x in dbuf,
    # 2x out dbuf, f32 cast, xn, reduction temps) within the budget, and each
    # tile buffer capped at 4 MiB to amortize per-grid-step overhead.
    tm = min(vmem_budget_bytes // (8 * row_bytes), (4 << 20) // row_bytes)
    if max_rows_per_tile is not None:
        tm = min(tm, max_rows_per_tile)
    if tm >= n:
        tm = n                                   # full-dim block (always legal)
    else:
        tm = max(8, (tm // 8) * 8)

    num_tiles = pl.cdiv(n, tm)
    # Shard the phase-1 HBM-read streaming across the two TensorCores on v7x;
    # on single-TC chips this is just a reshaped (equal-work) loop.
    n_splits = 2 if num_tiles >= 8 else 1
    steps = pl.cdiv(num_tiles, n_splits)
    ragged = (n % tm != 0) or (n_splits * steps != num_tiles)

    if n_splits * steps == num_tiles:
        x_idx = lambda c, i: (c * steps + i, 0)
    else:
        # Clamp OOB tiles to the last valid tile; the kernel masks them to 0.
        x_idx = lambda c, i: (jnp.minimum(c * steps + i, num_tiles - 1), 0)

    partials = pl.pallas_call(
        functools.partial(_etf_stats_kernel, n_rows=n, block_rows=tm,
                          steps_per_split=steps, ragged=ragged),
        out_shape=jax.ShapeDtypeStruct((n_splits, 2, d), f32),
        grid=(n_splits, steps),
        in_specs=[pl.BlockSpec((tm, d), x_idx)],
        out_specs=pl.BlockSpec((None, 2, d), lambda c, i: (c, 0, 0)),
        compiler_params=pltpu.CompilerParams(
            dimension_semantics=("parallel", "arbitrary"),
            vmem_limit_bytes=int(vmem_budget_bytes)),
    )(x)

    # Tiny (2, d) finalize in plain JAX: combine per-split partial sums and
    # fold BN into a single per-column scale/shift (negligible vs. N x D work).
    sums = jnp.sum(partials, axis=0)                    # (2, d)
    inv_n = 1.0 / n
    mean = sums[0] * inv_n
    var = jnp.maximum(sums[1] * inv_n - mean * mean, 0.0)
    scale = gamma.astype(f32) * jax.lax.rsqrt(var + BN_EPS)
    shift = beta.astype(f32) - mean * scale
    ss = jnp.stack([scale, shift], axis=0)              # (2, d)

    out = pl.pallas_call(
        _etf_norm_kernel,
        out_shape=jax.ShapeDtypeStruct((n, d), x.dtype),
        grid=(num_tiles,),
        in_specs=[
            pl.BlockSpec((tm, d), lambda i: (i, 0)),
            pl.BlockSpec((2, d), lambda i: (0, 0)),
        ],
        out_specs=pl.BlockSpec((tm, d), lambda i: (i, 0)),
        compiler_params=pltpu.CompilerParams(
            dimension_semantics=("parallel",),
            vmem_limit_bytes=int(vmem_budget_bytes)),
    )(x, ss)
    return out


# ---------------------------------------------------------------------------
# Plain-JAX glue (module __init__ fidelity) and reference
# ---------------------------------------------------------------------------
def make_etf_matrix(feat_in, num_classes, key):
    """Replicates __init__'s ori_M (unused in forward)."""
    a = jax.random.uniform(key, (feat_in, num_classes), dtype=jnp.float32)
    p, _ = jnp.linalg.qr(a)
    eye = jnp.eye(num_classes, dtype=jnp.float32)
    one = jnp.ones((num_classes, num_classes), dtype=jnp.float32)
    return jnp.sqrt(num_classes / (num_classes - 1.0)) * (p @ (eye - one / num_classes))


def reference_forward(x, gamma, beta):
    x = x.astype(jnp.float32)
    mean = jnp.mean(x, axis=0, keepdims=True)
    var = jnp.mean((x - mean) ** 2, axis=0, keepdims=True)
    xn = (x - mean) / jnp.sqrt(var + BN_EPS) * gamma[None, :] + beta[None, :]
    norm = jnp.maximum(jnp.sqrt(jnp.sum(xn ** 2, axis=1, keepdims=True)), CLAMP_MIN)
    return xn / norm


if __name__ == "__main__":
    batch, feat_in, num_classes = 8, 32, 16

    key = jax.random.PRNGKey(0)
    kx, kp = jax.random.split(key)

    x = jax.random.normal(kx, (batch, feat_in), dtype=jnp.float32)
    # BatchNorm1d default parameter init: weight=1, bias=0 (deterministic).
    gamma = jnp.ones((feat_in,), dtype=jnp.float32)
    beta = jnp.zeros((feat_in,), dtype=jnp.float32)

    # ori_M is built but not used in forward (matches the PyTorch module).
    _ori_M = make_etf_matrix(feat_in, num_classes, kp)

    out = jax.block_until_ready(etf_classifier_forward(x, gamma, beta))
    ref = reference_forward(x, gamma, beta)
    assert out.shape == (batch, feat_in)
    assert jnp.allclose(out, ref, atol=1e-5, rtol=1e-5), \
        float(jnp.max(jnp.abs(out - ref)))

    # Also exercise the tiled two-phase path: non-128-multiple feature dim
    # (ragged lanes, no HBM pad/slice), non-tile-multiple rows (masked last
    # tile), and the 2-way parallel phase-1 split.
    n2, d2 = 2000, 200
    x2 = jax.random.normal(jax.random.PRNGKey(1), (n2, d2), dtype=jnp.float32)
    g2 = 1.0 + 0.1 * jax.random.normal(jax.random.PRNGKey(2), (d2,), dtype=jnp.float32)
    b2 = 0.1 * jax.random.normal(jax.random.PRNGKey(3), (d2,), dtype=jnp.float32)
    out2 = jax.block_until_ready(
        etf_classifier_forward(x2, g2, b2, fused_bytes_limit=0,
                               max_rows_per_tile=256))
    ref2 = reference_forward(x2, g2, b2)
    assert jnp.allclose(out2, ref2, atol=1e-4, rtol=1e-4), \
        float(jnp.max(jnp.abs(out2 - ref2)))

    print("KERNEL_OK")
</pallas_src>

<mosaic_0001>
module attributes {stable_mosaic.version = 11 : i64} {
  func.func @_etf_fused_kernel(%arg0: memref<8x32xf32, #tpu.memory_space<vmem>>, %arg1: memref<2x32xf32, #tpu.memory_space<vmem>>, %arg2: memref<8x32xf32, #tpu.memory_space<vmem>>) attributes {dimension_semantics = [], scalar_prefetch = 0 : i64, scratch_operands = 0 : i64, tpu.core_type = #tpu.core_type<tc>} {
    %c0 = arith.constant 0 : index
    %c0_0 = arith.constant 0 : index
    %0 = vector.load %arg0[%c0, %c0_0] : memref<8x32xf32, #tpu.memory_space<vmem>>, vector<8x32xf32>
    %cst = arith.constant dense<0.000000e+00> : vector<32xf32>
    %1 = vector.multi_reduction <add>, %0, %cst [0] : vector<8x32xf32> to vector<32xf32>
    %2 = vector.shape_cast %1 : vector<32xf32> to vector<1x32xf32>
    %3 = arith.mulf %0, %0 : vector<8x32xf32>
    %cst_1 = arith.constant dense<0.000000e+00> : vector<32xf32>
    %4 = vector.multi_reduction <add>, %3, %cst_1 [0] : vector<8x32xf32> to vector<32xf32>
    %5 = vector.shape_cast %4 : vector<32xf32> to vector<1x32xf32>
    %cst_2 = arith.constant 1.250000e-01 : f32
    %6 = vector.broadcast %cst_2 : f32 to vector<1x32xf32>
    %7 = arith.mulf %2, %6 : vector<1x32xf32>
    %cst_3 = arith.constant 1.250000e-01 : f32
    %8 = vector.broadcast %cst_3 : f32 to vector<1x32xf32>
    %9 = arith.mulf %5, %8 : vector<1x32xf32>
    %10 = arith.mulf %7, %7 : vector<1x32xf32>
    %11 = arith.subf %9, %10 : vector<1x32xf32>
    %cst_4 = arith.constant 0.000000e+00 : f32
    %12 = vector.broadcast %cst_4 : f32 to vector<1x32xf32>
    %13 = arith.maximumf %11, %12 : vector<1x32xf32>
    %cst_5 = arith.constant 9.99999974E-6 : f32
    %14 = vector.broadcast %cst_5 : f32 to vector<1x32xf32>
    %15 = arith.addf %13, %14 : vector<1x32xf32>
    %16 = math.rsqrt %15 : vector<1x32xf32>
    %c0_6 = arith.constant 0 : index
    %c0_7 = arith.constant 0 : index
    %17 = vector.load %arg1[%c0_6, %c0_7] : memref<2x32xf32, #tpu.memory_space<vmem>>, vector<1x32xf32>
    %18 = arith.mulf %16, %17 : vector<1x32xf32>
    %c1 = arith.constant 1 : index
    %c0_8 = arith.constant 0 : index
    %19 = vector.load %arg1[%c1, %c0_8] : memref<2x32xf32, #tpu.memory_space<vmem>>, vector<1x32xf32>
    %20 = arith.mulf %7, %18 : vector<1x32xf32>
    %21 = arith.subf %19, %20 : vector<1x32xf32>
    %22 = vector.broadcast %18 : vector<1x32xf32> to vector<8x32xf32>
    %23 = arith.mulf %0, %22 : vector<8x32xf32>
    %24 = vector.broadcast %21 : vector<1x32xf32> to vector<8x32xf32>
    %25 = arith.addf %23, %24 : vector<8x32xf32>
    %26 = arith.mulf %25, %25 : vector<8x32xf32>
    %cst_9 = arith.constant dense<0.000000e+00> : vector<8xf32>
    %27 = vector.multi_reduction <add>, %26, %cst_9 [1] : vector<8x32xf32> to vector<8xf32>
    %28 = vector.shape_cast %27 : vector<8xf32> to vector<8x1xf32>
    %cst_10 = arith.constant 1.000000e-16 : f32
    %29 = vector.broadcast %cst_10 : f32 to vector<8x1xf32>
    %30 = arith.maximumf %28, %29 : vector<8x1xf32>
    %31 = math.rsqrt %30 : vector<8x1xf32>
    %32 = vector.broadcast %31 : vector<8x1xf32> to vector<8x32xf32>
    %33 = arith.mulf %25, %32 : vector<8x32xf32>
    %c0_11 = arith.constant 0 : index
    %c0_12 = arith.constant 0 : index
    %34 = vector.load %arg2[%c0_11, %c0_12] : memref<8x32xf32, #tpu.memory_space<vmem>>, vector<8x32xf32>
    tpu.vector_store %arg2[%c0_11, %c0_12], %33 {strides = array<i32>} : memref<8x32xf32, #tpu.memory_space<vmem>>, vector<8x32xf32>,
    return
  }
}

</mosaic_0001>

<llo_original>
// kernel: tpu_custom_call.1
$region0: #{tpu_custom_call.1}
  #allocation0 [shape = 'u32[]', space=smem, size = 0x4, offset = 0x4, fixed_abs, tag = 'smem constant byte address 0x4 - core index']
  #allocation1 [shape = 'u32[144,128]{1,0:T(1,128)}', space=vmem, size = 0x12000, scoped, tag = 'internal scratch']
  %s0 = inlined_call_operand.hbm [shape: f32[8,32], index: 0, kind: input, shape index: {}]
  %s1 = inlined_call_operand.vmem [shape: f32[2,32], index: 1, kind: input, shape index: {}]
  %s2 = inlined_call_operand.hbm [shape: f32[8,32], index: 2, kind: output, shape index: {}]
  %s3 = sld [smem:[#allocation0]]
  $region22: #{tpu_custom_call.1} parent=0
    _
  %s5 = ssub.s32 1, %s3
  %s6 = scalar_select 0, %s5, %s3
  $region1: #{tpu_custom_call.1} parent=0
    #allocation2 [shape = 'u8[4096]{0}', space=vmem, size = 0x1000, scoped, tag = 'input window, operand 0, single buffered']
    #allocation3 [shape = 's32[1]{0}', space=sflag, size = 0x4, scoped, tag = 'scoped memory for tpu_custom_call.1']
    #allocation4 [shape = 's32[1]{0}', space=sflag, size = 0x4, scoped, tag = 'scoped memory for tpu_custom_call.1']
    #allocation5 [shape = 'u8[4096]{0}', space=vmem, size = 0x1000, scoped, tag = 'output window, operand 0, single buffered']
    %7 = vsyncpa [#allocation3], 0
    %8 = vsyncpa [#allocation4], 0
    // Predicated region
    $region2: #{tpu_custom_call.1} parent=1 // pred_check
      _
    $region3: #{tpu_custom_call.1} parent=1 // pred_check_branch
      %10 = sbr.rel (0) target = $region5
    $region4: #{tpu_custom_call.1} parent=1 // pred_region
      %s12 = ssub.s32 128, 128
      %13 = vsyncadd [#allocation3], %s12
      %s15 = sshll.u32 [#allocation2], 4
      %s16 = int_to_ptr.vmem [resolvable:$true] %s15
      %18 = dma.hbm_to_vmem [thread:$0]  %s0, 128, %s16, [#allocation3]
    $region5: #{tpu_custom_call.1} parent=1 // pred_fallthru
      _
    // Predicated region
    $region6: #{tpu_custom_call.1} parent=1 // pred_check
      _
    $region7: #{tpu_custom_call.1} parent=1 // pred_check_branch
      %20 = sbr.rel (0) target = $region9
    $region8: #{tpu_custom_call.1} parent=1 // pred_region
      _
    $region9: #{tpu_custom_call.1} parent=1 // pred_fallthru
      _
    // Predicated region
    $region10: #{tpu_custom_call.1} parent=1 // pred_check
      _
    $region11: #{tpu_custom_call.1} parent=1 // pred_check_branch
      %22 = sbr.rel (0) target = $region13
    $region12: #{tpu_custom_call.1} parent=1 // pred_region
      %23 = dma.done [#allocation3], 128
    $region13: #{tpu_custom_call.1} parent=1 // pred_fallthru
      _
    %v24 = vld [vmem:[#allocation2] sm:$0xff]
    %vm25 = vcmask 261120
    %v26 = vsel %vm25, %v24, 0.0
    %v27 = vrot.slane %v26, 4
    %v28 = vadd.f32 %v26, %v27
    %v29 = vrot.slane %v28, 2
    %v30 = vadd.f32 %v28, %v29
    %v31 = vrot.slane %v30, 1
    %v32 = vadd.f32 %v30, %v31
    %v33 = vmul.f32 %v24, %v24
    %v34 = vsel %vm25, %v33, 0.0
    %v35 = vrot.slane %v34, 4
    %v36 = vadd.f32 %v34, %v35
    %v37 = vrot.slane %v36, 2
    %v38 = vadd.f32 %v36, %v37
    %v39 = vrot.slane %v38, 1
    %v40 = vadd.f32 %v38, %v39
    %v41 = vmul.f32 %v32, 0.125
    %v42 = vmul.f32 %v40, 0.125
    %v43 = vmul.f32 %v41, %v41
    %v44 = vsub.f32 %v42, %v43
    %v45 = vmax.f32 %v44, 0.0
    %v46 = vadd.f32 %v45, 1e-05
    %v47 = vrsqrt.pop %v46
    %v48 = vld [vmem:[%s1] sm:$0x1]
    %v49 = vmul.f32 %v47, %v48
    %v50 = vld [vmem:[%s1 + $0x1] sm:$0x1]
    %v51 = vmul.f32 %v41, %v49
    %v52 = vsub.f32 %v50, %v51
    %v53 = vlaneseq
    %v54 = vshrl.u32 %v53, 7
    %v55 = vsub.s32 0, %v54
    %v56 = vrot.slane %v49, %v55
    %v57 = vmul.f32 %v24, %v56
    %v58 = vlaneseq
    %v59 = vshrl.u32 %v58, 7
    %v60 = vsub.s32 0, %v59
    %v61 = vrot.slane %v52, %v60
    %v62 = vadd.f32 %v57, %v61
    %v63 = vmul.f32 %v62, %v62
    %v64 = vsel %vm25, %v63, 0.0
    %65 = vadd.xlane.f32.xlu0 %v64
    %v66 = vpop.xlane.xlu0 %65
    %v67 = vmax.f32 %v66, 1e-16
    %v68 = vrsqrt.pop %v67
    %v69 = vmul.f32 %v62, %v68
    %70 = vst.msk [vmem:[#allocation5] sm:$0xff] %vm25, %v69
    // Predicated region
    $region14: #{tpu_custom_call.1} parent=1 // pred_check
      _
    $region15: #{tpu_custom_call.1} parent=1 // pred_check_branch
      %72 = sbr.rel (0) target = $region17
    $region16: #{tpu_custom_call.1} parent=1 // pred_region
      %s74 = ssub.s32 128, 128
      %75 = vsyncadd [#allocation4], %s74
      %s77 = sshll.u32 [#allocation5], 4
      %s78 = int_to_ptr.vmem [resolvable:$true] %s77
      %80 = dma.vmem_to_hbm [thread:$0]  %s78, 128, %s2, [#allocation4]
    $region17: #{tpu_custom_call.1} parent=1 // pred_fallthru
      _
    // Predicated region
    $region18: #{tpu_custom_call.1} parent=1 // pred_check
      _
    $region19: #{tpu_custom_call.1} parent=1 // pred_check_branch
      %82 = sbr.rel (0) target = $region21
    $region20: #{tpu_custom_call.1} parent=1 // pred_region
      %83 = dma.done [#allocation4], 128
    $region21: #{tpu_custom_call.1} parent=1 // pred_fallthru
      _
    %84 = vsyncpa [#allocation3], 1
    %85 = vsyncpa [#allocation4], 1

</llo_original>
